<compile_context>
chip_gen: v5e
topology: v5e:2x2
jax: 0.10.0
libtpu: 0.0.40
codegen_flags: <defaults>
</compile_context>

<pallas_src>
import jax
import jax.numpy as jnp
from jax.experimental import pallas as pl
from jax.experimental.pallas import tpu as pltpu

LANE = 128
# ~2 MiB of f32 per block per buffer (1 MiB for bf16).
TARGET_BLOCK_ELEMS = 512 * 1024
# Candidate lane-dense slab widths (widest first).
_WIDTHS = (8192, 4096, 2048, 1024, 512, 256, 128)


def _swish_kernel(x_ref, o_ref):
    # Compute in f32 for accuracy; cast back to the I/O dtype on store.
    xf = x_ref[...].astype(jnp.float32)

    # Numerically stable sigmoid (no overflow for any finite x):
    #   z = exp(-|x|) in (0, 1]
    #   sigmoid(x) = 1/(1+z)   if x >= 0
    #              = z/(1+z)   if x <  0
    z = jnp.exp(-jnp.abs(xf))          # EUP transcendental
    r = 1.0 / (1.0 + z)                # exact f32 divide (kernel is mem-bound)
    sig = jnp.where(xf >= 0.0, r, z * r)

    o_ref[...] = (xf * sig).astype(o_ref.dtype)


def _choose_slab(n):
    """Largest lane-dense width that divides n (no padding needed)."""
    for w in _WIDTHS:
        if n % w == 0:
            return w, n // w
    return None, None


def swish(x, *, donate_input: bool = False):
    """Elementwise Swish: x * sigmoid(x); same shape/dtype as the input.

    donate_input=True aliases the input HBM buffer with the output
    (input_output_aliases) -- only beneficial when the caller actually
    donates the buffer (e.g. inside jit with donate_argnums).
    """
    orig_shape = x.shape
    dtype = x.dtype
    n = x.size
    if n == 0:
        return x

    flat = x.reshape(-1)
    w, rows = _choose_slab(n)
    padded = False
    if w is None:
        # Rare fallback (element count not a multiple of 128): pad to a full
        # lane.  Conv activations normally take the no-copy path above.
        w = LANE
        pad = (-n) % w
        flat = jnp.pad(flat, (0, pad))
        rows = flat.size // w
        padded = True

    slab = flat.reshape(rows, w)

    # Row-block: either the full row extent (small tensors) or a multiple of 8
    # sized so a block is ~TARGET_BLOCK_ELEMS elements.
    row_block = min(rows, max(8, TARGET_BLOCK_ELEMS // w))
    grid = (pl.cdiv(rows, row_block),)

    itemsize = jnp.dtype(dtype).itemsize
    n_slab = rows * w
    cost = pl.CostEstimate(
        flops=5 * n_slab,            # abs/add/div/select/mul per element
        transcendentals=1 * n_slab,  # exp per element
        bytes_accessed=2 * n_slab * itemsize,
    )

    extra_kwargs = {}
    if donate_input:
        extra_kwargs["input_output_aliases"] = {0: 0}

    out = pl.pallas_call(
        _swish_kernel,
        out_shape=jax.ShapeDtypeStruct((rows, w), dtype),
        grid_spec=pltpu.PrefetchScalarGridSpec(
            num_scalar_prefetch=0,
            grid=grid,
            in_specs=[pl.BlockSpec((row_block, w), lambda i: (i, 0))],
            out_specs=pl.BlockSpec((row_block, w), lambda i: (i, 0)),
        ),
        compiler_params=pltpu.CompilerParams(
            dimension_semantics=("parallel",),
        ),
        cost_estimate=cost,
        **extra_kwargs,
    )(slab)

    if padded:
        out = out.reshape(-1)[:n]
    return out.reshape(orig_shape)


# TODO(synk): only the forward pass is implemented; the custom autograd
# backward of SwishEfficient is not translated (would be a separate kernel /
# jax.custom_vjp).


if __name__ == "__main__":
    key = jax.random.PRNGKey(0)

    # Small 5-D activation tensor typical of X3D: (N, C, T, H, W).
    x = jax.random.normal(key, (2, 4, 8, 16, 16), dtype=jnp.float32)
    y = swish(x)
    jax.block_until_ready(y)

    y_ref = x * jax.nn.sigmoid(x)
    assert y.shape == x.shape and y.dtype == x.dtype
    assert jnp.allclose(y, y_ref, atol=1e-5, rtol=1e-5)

    # Exercise the padded fallback path (size not a multiple of 128).
    x2 = jax.random.normal(jax.random.PRNGKey(1), (3, 5, 7), dtype=jnp.float32)
    y2 = swish(x2)
    jax.block_until_ready(y2)
    y2_ref = x2 * jax.nn.sigmoid(x2)
    assert y2.shape == x2.shape and y2.dtype == x2.dtype
    assert jnp.allclose(y2, y2_ref, atol=1e-5, rtol=1e-5)

    print("KERNEL_OK")
</pallas_src>

<mosaic_0001>
module attributes {stable_mosaic.version = 11 : i64} {
  func.func @_swish_kernel(%arg0: i32, %arg1: memref<2x8192xf32, #tpu.memory_space<vmem>>, %arg2: memref<2x8192xf32, #tpu.memory_space<vmem>>) attributes {dimension_semantics = [#tpu.dimension_semantics<parallel>], iteration_bounds = array<i64: 1>, scalar_prefetch = 0 : i64, scratch_operands = 0 : i64, tpu.core_type = #tpu.core_type<tc>, window_params = [{transform_indices = @transform_0, window_bounds = array<i64: 2, 8192>}, {transform_indices = @transform_1, window_bounds = array<i64: 2, 8192>}]} {
    %c0 = arith.constant 0 : index
    %c0_0 = arith.constant 0 : index
    %0 = vector.load %arg1[%c0, %c0_0] : memref<2x8192xf32, #tpu.memory_space<vmem>>, vector<2x8192xf32>
    %1 = math.absf %0 : vector<2x8192xf32>
    %cst = arith.constant 0.000000e+00 : f32
    %2 = vector.broadcast %cst : f32 to vector<2x8192xf32>
    %3 = arith.subf %2, %1 : vector<2x8192xf32>
    %4 = math.exp %3 : vector<2x8192xf32>
    %cst_1 = arith.constant 1.000000e+00 : f32
    %5 = vector.broadcast %cst_1 : f32 to vector<2x8192xf32>
    %6 = arith.addf %5, %4 : vector<2x8192xf32>
    %cst_2 = arith.constant 1.000000e+00 : f32
    %7 = vector.broadcast %cst_2 : f32 to vector<2x8192xf32>
    %8 = arith.divf %7, %6 : vector<2x8192xf32>
    %cst_3 = arith.constant 0.000000e+00 : f32
    %9 = vector.broadcast %cst_3 : f32 to vector<2x8192xf32>
    %10 = arith.cmpf oge, %0, %9 : vector<2x8192xf32>
    %11 = arith.mulf %4, %8 : vector<2x8192xf32>
    %12 = arith.select %10, %8, %11 : vector<2x8192xi1>, vector<2x8192xf32>
    %13 = arith.mulf %0, %12 : vector<2x8192xf32>
    %c0_4 = arith.constant 0 : index
    %c0_5 = arith.constant 0 : index
    %14 = vector.load %arg2[%c0_4, %c0_5] : memref<2x8192xf32, #tpu.memory_space<vmem>>, vector<2x8192xf32>
    tpu.vector_store %arg2[%c0_4, %c0_5], %13 {strides = array<i32>} : memref<2x8192xf32, #tpu.memory_space<vmem>>, vector<2x8192xf32>,
    return
  }
  func.func @transform_0(%arg0: i32) -> (i32, i32) {
    %c0_i32 = arith.constant 0 : i32
    %c0_i32_0 = arith.constant 0 : i32
    return %arg0, %c0_i32 : i32, i32
  }
  func.func @transform_1(%arg0: i32) -> (i32, i32) {
    %c0_i32 = arith.constant 0 : i32
    %c0_i32_0 = arith.constant 0 : i32
    return %arg0, %c0_i32 : i32, i32
  }
}

</mosaic_0001>

<llo_original>
// kernel: tpu_custom_call.1
$region0: #{tpu_custom_call.1}
  #allocation0 [shape = 'u32[]', space=smem, size = 0x4, offset = 0x4, fixed_abs, tag = 'smem constant byte address 0x4 - core index']
  #allocation1 [shape = 'u32[72,128]{1,0:T(1,128)}', space=vmem, size = 0x9000, scoped, tag = 'internal scratch']
  %s0 = inlined_call_operand.hbm [shape: f32[2,8192], index: 0, kind: input, shape index: {}]
  %s1 = inlined_call_operand.hbm [shape: f32[2,8192], index: 1, kind: output, shape index: {}]
  %s2 = sld [smem:[#allocation0]]
  $region18: #{tpu_custom_call.1} parent=0
    _
  %s4 = ssub.s32 1, %s2
  %s5 = scalar_select 0, %s4, %s2
  $region1: #{tpu_custom_call.1} parent=0
    #allocation2 [shape = 'u8[65536]{0}', space=vmem, size = 0x10000, scoped, tag = 'input window, operand 0, single buffered']
    #allocation3 [shape = 's32[1]{0}', space=sflag, size = 0x4, scoped, tag = 'scoped memory for tpu_custom_call.1']
    #allocation4 [shape = 's32[1]{0}', space=sflag, size = 0x4, scoped, tag = 'scoped memory for tpu_custom_call.1']
    #allocation5 [shape = 'u8[65536]{0}', space=vmem, size = 0x10000, scoped, tag = 'output window, operand 0, single buffered']
    %6 = vsyncpa [#allocation3], 0
    %7 = vsyncpa [#allocation4], 0
    // Predicated region
    $region2: #{tpu_custom_call.1} parent=1 // pred_check
      _
    $region3: #{tpu_custom_call.1} parent=1 // pred_check_branch
      %9 = sbr.rel (0) target = $region5
    $region4: #{tpu_custom_call.1} parent=1 // pred_region
      %11 = vsyncadd [#allocation3], 0
      %s13 = sshll.u32 %s0, 4
      %s14 = int_to_ptr.hbm [resolvable:$true] %s13
      %s15 = sshll.u32 [#allocation2], 4
      %s16 = int_to_ptr.vmem [resolvable:$true] %s15
      %18 = dma.hbm_to_vmem [thread:$0]  %s14, 2048, %s16, [#allocation3]
    $region5: #{tpu_custom_call.1} parent=1 // pred_fallthru
      _
    // Predicated region
    $region6: #{tpu_custom_call.1} parent=1 // pred_check
      _
    $region7: #{tpu_custom_call.1} parent=1 // pred_check_branch
      %20 = sbr.rel (0) target = $region9
    $region8: #{tpu_custom_call.1} parent=1 // pred_region
      %22 = dma.done [#allocation3], 2048
    $region9: #{tpu_custom_call.1} parent=1 // pred_fallthru
      _
    %v23 = vld [vmem:[#allocation2] sm:$0xff]
    %v24 = vld [vmem:[#allocation2 + $0x8] sm:$0xff]
    %v25 = vld [vmem:[#allocation2 + $0x10] sm:$0xff]
    %v26 = vld [vmem:[#allocation2 + $0x18] sm:$0xff]
    %v27 = vld [vmem:[#allocation2 + $0x20] sm:$0xff]
    %v28 = vld [vmem:[#allocation2 + $0x28] sm:$0xff]
    %v29 = vld [vmem:[#allocation2 + $0x30] sm:$0xff]
    %v30 = vld [vmem:[#allocation2 + $0x38] sm:$0xff]
    %v31 = vld [vmem:[#allocation2 + $0x40] sm:$0xff]
    %v32 = vld [vmem:[#allocation2 + $0x48] sm:$0xff]
    %v33 = vld [vmem:[#allocation2 + $0x50] sm:$0xff]
    %v34 = vld [vmem:[#allocation2 + $0x58] sm:$0xff]
    %v35 = vld [vmem:[#allocation2 + $0x60] sm:$0xff]
    %v36 = vld [vmem:[#allocation2 + $0x68] sm:$0xff]
    %v37 = vld [vmem:[#allocation2 + $0x70] sm:$0xff]
    %v38 = vld [vmem:[#allocation2 + $0x78] sm:$0xff]
    %v39 = vand.u32 2147483647, %v23
    %v40 = vand.u32 2147483647, %v24
    %v41 = vand.u32 2147483647, %v25
    %v42 = vand.u32 2147483647, %v26
    %v43 = vand.u32 2147483647, %v27
    %v44 = vand.u32 2147483647, %v28
    %v45 = vand.u32 2147483647, %v29
    %v46 = vand.u32 2147483647, %v30
    %v47 = vand.u32 2147483647, %v31
    %v48 = vand.u32 2147483647, %v32
    %v49 = vand.u32 2147483647, %v33
    %v50 = vand.u32 2147483647, %v34
    %v51 = vand.u32 2147483647, %v35
    %v52 = vand.u32 2147483647, %v36
    %v53 = vand.u32 2147483647, %v37
    %v54 = vand.u32 2147483647, %v38
    %v55 = vsub.f32 0.0, %v39
    %v56 = vsub.f32 0.0, %v40
    %v57 = vsub.f32 0.0, %v41
    %v58 = vsub.f32 0.0, %v42
    %v59 = vsub.f32 0.0, %v43
    %v60 = vsub.f32 0.0, %v44
    %v61 = vsub.f32 0.0, %v45
    %v62 = vsub.f32 0.0, %v46
    %v63 = vsub.f32 0.0, %v47
    %v64 = vsub.f32 0.0, %v48
    %v65 = vsub.f32 0.0, %v49
    %v66 = vsub.f32 0.0, %v50
    %v67 = vsub.f32 0.0, %v51
    %v68 = vsub.f32 0.0, %v52
    %v69 = vsub.f32 0.0, %v53
    %v70 = vsub.f32 0.0, %v54
    %v71 = vmul.f32 %v55, 1.442695
    %v72 = vpow.pop %v71
    %v73 = vmul.f32 %v56, 1.442695
    %v74 = vpow.pop %v73
    %v75 = vmul.f32 %v57, 1.442695
    %v76 = vpow.pop %v75
    %v77 = vmul.f32 %v58, 1.442695
    %v78 = vpow.pop %v77
    %v79 = vmul.f32 %v59, 1.442695
    %v80 = vpow.pop %v79
    %v81 = vmul.f32 %v60, 1.442695
    %v82 = vpow.pop %v81
    %v83 = vmul.f32 %v61, 1.442695
    %v84 = vpow.pop %v83
    %v85 = vmul.f32 %v62, 1.442695
    %v86 = vpow.pop %v85
    %v87 = vmul.f32 %v63, 1.442695
    %v88 = vpow.pop %v87
    %v89 = vmul.f32 %v64, 1.442695
    %v90 = vpow.pop %v89
    %v91 = vmul.f32 %v65, 1.442695
    %v92 = vpow.pop %v91
    %v93 = vmul.f32 %v66, 1.442695
    %v94 = vpow.pop %v93
    %v95 = vmul.f32 %v67, 1.442695
    %v96 = vpow.pop %v95
    %v97 = vmul.f32 %v68, 1.442695
    %v98 = vpow.pop %v97
    %v99 = vmul.f32 %v69, 1.442695
    %v100 = vpow.pop %v99
    %v101 = vmul.f32 %v70, 1.442695
    %v102 = vpow.pop %v101
    %v103 = vadd.f32 %v72, 1.0
    %v104 = vadd.f32 %v74, 1.0
    %v105 = vadd.f32 %v76, 1.0
    %v106 = vadd.f32 %v78, 1.0
    %v107 = vadd.f32 %v80, 1.0
    %v108 = vadd.f32 %v82, 1.0
    %v109 = vadd.f32 %v84, 1.0
    %v110 = vadd.f32 %v86, 1.0
    %v111 = vadd.f32 %v88, 1.0
    %v112 = vadd.f32 %v90, 1.0
    %v113 = vadd.f32 %v92, 1.0
    %v114 = vadd.f32 %v94, 1.0
    %v115 = vadd.f32 %v96, 1.0
    %v116 = vadd.f32 %v98, 1.0
    %v117 = vadd.f32 %v100, 1.0
    %v118 = vadd.f32 %v102, 1.0
    %v119 = vrcp.pop %v103
    %v120 = vmul.f32 %v103, %v119
    %v121 = vsub.f32 1.0, %v120
    %v122 = vmul.f32 %v119, %v121
    %v123 = vadd.f32 %v119, %v122
    %vm124 = vweird.f32 %v103
    %vm125 = vweird.f32 %v119
    %vm126 = vmor %vm124, %vm125
    %v127 = vsel %vm126, %v119, %v123
    %v128 = vand.u32 2147483647, %v103
    %vm129 = vcmp.eq.f32.partialorder %v128, 8.507059e+37
    %v130 = vand.u32 %v103, 2147483648
    %v131 = vor.u32 1.1754944e-38, %v130
    %v132 = vsel %vm129, %v131, %v127
    %v133 = vmul.f32 1.0, %v132
    %v134 = vrcp.pop %v104
    %v135 = vmul.f32 %v104, %v134
    %v136 = vsub.f32 1.0, %v135
    %v137 = vmul.f32 %v134, %v136
    %v138 = vadd.f32 %v134, %v137
    %vm139 = vweird.f32 %v104
    %vm140 = vweird.f32 %v134
    %vm141 = vmor %vm139, %vm140
    %v142 = vsel %vm141, %v134, %v138
    %v143 = vand.u32 2147483647, %v104
    %vm144 = vcmp.eq.f32.partialorder %v143, 8.507059e+37
    %v145 = vand.u32 %v104, 2147483648
    %v146 = vor.u32 1.1754944e-38, %v145
    %v147 = vsel %vm144, %v146, %v142
    %v148 = vmul.f32 1.0, %v147
    %v149 = vrcp.pop %v105
    %v150 = vmul.f32 %v105, %v149
    %v151 = vsub.f32 1.0, %v150
    %v152 = vmul.f32 %v149, %v151
    %v153 = vadd.f32 %v149, %v152
    %vm154 = vweird.f32 %v105
    %vm155 = vweird.f32 %v149
    %vm156 = vmor %vm154, %vm155
    %v157 = vsel %vm156, %v149, %v153
    %v158 = vand.u32 2147483647, %v105
    %vm159 = vcmp.eq.f32.partialorder %v158, 8.507059e+37
    %v160 = vand.u32 %v105, 2147483648
    %v161 = vor.u32 1.1754944e-38, %v160
    %v162 = vsel %vm159, %v161, %v157
    %v163 = vmul.f32 1.0, %v162
    %v164 = vrcp.pop %v106
    %v165 = vmul.f32 %v106, %v164
    %v166 = vsub.f32 1.0, %v165
    %v167 = vmul.f32 %v164, %v166
    %v168 = vadd.f32 %v164, %v167
    %vm169 = vweird.f32 %v106
    %vm170 = vweird.f32 %v164
    %vm171 = vmor %vm169, %vm170
    %v172 = vsel %vm171, %v164, %v168
    %v173 = vand.u32 2147483647, %v106
    %vm174 = vcmp.eq.f32.partialorder %v173, 8.507059e+37
    %v175 = vand.u32 %v106, 2147483648
    %v176 = vor.u32 1.1754944e-38, %v175
    %v177 = vsel %vm174, %v176, %v172
    %v178 = vmul.f32 1.0, %v177
    %v179 = vrcp.pop %v107
    %v180 = vmul.f32 %v107, %v179
    %v181 = vsub.f32 1.0, %v180
    %v182 = vmul.f32 %v179, %v181
    %v183 = vadd.f32 %v179, %v182
    %vm184 = vweird.f32 %v107
    %vm185 = vweird.f32 %v179
    %vm186 = vmor %vm184, %vm185
    %v187 = vsel %vm186, %v179, %v183
    %v188 = vand.u32 2147483647, %v107
    %vm189 = vcmp.eq.f32.partialorder %v188, 8.507059e+37
    %v190 = vand.u32 %v107, 2147483648
    %v191 = vor.u32 1.1754944e-38, %v190
    %v192 = vsel %vm189, %v191, %v187
    %v193 = vmul.f32 1.0, %v192
    %v194 = vrcp.pop %v108
    %v195 = vmul.f32 %v108, %v194
    %v196 = vsub.f32 1.0, %v195
    %v197 = vmul.f32 %v194, %v196
    %v198 = vadd.f32 %v194, %v197
    %vm199 = vweird.f32 %v108
    %vm200 = vweird.f32 %v194
    %vm201 = vmor %vm199, %vm200
    %v202 = vsel %vm201, %v194, %v198
    %v203 = vand.u32 2147483647, %v108
    %vm204 = vcmp.eq.f32.partialorder %v203, 8.507059e+37
    %v205 = vand.u32 %v108, 2147483648
    %v206 = vor.u32 1.1754944e-38, %v205
    %v207 = vsel %vm204, %v206, %v202
    %v208 = vmul.f32 1.0, %v207
    %v209 = vrcp.pop %v109
    %v210 = vmul.f32 %v109, %v209
    %v211 = vsub.f32 1.0, %v210
    %v212 = vmul.f32 %v209, %v211
    %v213 = vadd.f32 %v209, %v212
    %vm214 = vweird.f32 %v109
    %vm215 = vweird.f32 %v209
    %vm216 = vmor %vm214, %vm215
    %v217 = vsel %vm216, %v209, %v213
    %v218 = vand.u32 2147483647, %v109
    %vm219 = vcmp.eq.f32.partialorder %v218, 8.507059e+37
    %v220 = vand.u32 %v109, 2147483648
    %v221 = vor.u32 1.1754944e-38, %v220
    %v222 = vsel %vm219, %v221, %v217
    %v223 = vmul.f32 1.0, %v222
    %v224 = vrcp.pop %v110
    %v225 = vmul.f32 %v110, %v224
    %v226 = vsub.f32 1.0, %v225
    %v227 = vmul.f32 %v224, %v226
    %v228 = vadd.f32 %v224, %v227
    %vm229 = vweird.f32 %v110
    %vm230 = vweird.f32 %v224
    %vm231 = vmor %vm229, %vm230
    %v232 = vsel %vm231, %v224, %v228
    %v233 = vand.u32 2147483647, %v110
    %vm234 = vcmp.eq.f32.partialorder %v233, 8.507059e+37
    %v235 = vand.u32 %v110, 2147483648
    %v236 = vor.u32 1.1754944e-38, %v235
    %v237 = vsel %vm234, %v236, %v232
    %v238 = vmul.f32 1.0, %v237
    %v239 = vrcp.pop %v111
    %v240 = vmul.f32 %v111, %v239
    %v241 = vsub.f32 1.0, %v240
    %v242 = vmul.f32 %v239, %v241
    %v243 = vadd.f32 %v239, %v242
    %vm244 = vweird.f32 %v111
    %vm245 = vweird.f32 %v239
    %vm246 = vmor %vm244, %vm245
    %v247 = vsel %vm246, %v239, %v243
    %v248 = vand.u32 2147483647, %v111
    %vm249 = vcmp.eq.f32.partialorder %v248, 8.507059e+37
    %v250 = vand.u32 %v111, 2147483648
    %v251 = vor.u32 1.1754944e-38, %v250
    %v252 = vsel %vm249, %v251, %v247
    %v253 = vmul.f32 1.0, %v252
    %v254 = vrcp.pop %v112
    %v255 = vmul.f32 %v112, %v254
    %v256 = vsub.f32 1.0, %v255
    %v257 = vmul.f32 %v254, %v256
    %v258 = vadd.f32 %v254, %v257
    %vm259 = vweird.f32 %v112
    %vm260 = vweird.f32 %v254
    %vm261 = vmor %vm259, %vm260
    %v262 = vsel %vm261, %v254, %v258
    %v263 = vand.u32 2147483647, %v112
    %vm264 = vcmp.eq.f32.partialorder %v263, 8.507059e+37
    %v265 = vand.u32 %v112, 2147483648
    %v266 = vor.u32 1.1754944e-38, %v265
    %v267 = vsel %vm264, %v266, %v262
    %v268 = vmul.f32 1.0, %v267
    %v269 = vrcp.pop %v113
    %v270 = vmul.f32 %v113, %v269
    %v271 = vsub.f32 1.0, %v270
    %v272 = vmul.f32 %v269, %v271
    %v273 = vadd.f32 %v269, %v272
    %vm274 = vweird.f32 %v113
    %vm275 = vweird.f32 %v269
    %vm276 = vmor %vm274, %vm275
    %v277 = vsel %vm276, %v269, %v273
    %v278 = vand.u32 2147483647, %v113
    %vm279 = vcmp.eq.f32.partialorder %v278, 8.507059e+37
    %v280 = vand.u32 %v113, 2147483648
    %v281 = vor.u32 1.1754944e-38, %v280
    %v282 = vsel %vm279, %v281, %v277
    %v283 = vmul.f32 1.0, %v282
    %v284 = vrcp.pop %v114
    %v285 = vmul.f32 %v114, %v284
    %v286 = vsub.f32 1.0, %v285
    %v287 = vmul.f32 %v284, %v286
    %v288 = vadd.f32 %v284, %v287
    %vm289 = vweird.f32 %v114
    %vm290 = vweird.f32 %v284
    %vm291 = vmor %vm289, %vm290
    %v292 = vsel %vm291, %v284, %v288
    %v293 = vand.u32 2147483647, %v114
    %vm294 = vcmp.eq.f32.partialorder %v293, 8.507059e+37
    %v295 = vand.u32 %v114, 2147483648
    %v296 = vor.u32 1.1754944e-38, %v295
    %v297 = vsel %vm294, %v296, %v292
    %v298 = vmul.f32 1.0, %v297
    %v299 = vrcp.pop %v115
    %v300 = vmul.f32 %v115, %v299
    %v301 = vsub.f32 1.0, %v300
    %v302 = vmul.f32 %v299, %v301
    %v303 = vadd.f32 %v299, %v302
    %vm304 = vweird.f32 %v115
    %vm305 = vweird.f32 %v299
    %vm306 = vmor %vm304, %vm305
    %v307 = vsel %vm306, %v299, %v303
    %v308 = vand.u32 2147483647, %v115
    %vm309 = vcmp.eq.f32.partialorder %v308, 8.507059e+37
    %v310 = vand.u32 %v115, 2147483648
    %v311 = vor.u32 1.1754944e-38, %v310
    %v312 = vsel %vm309, %v311, %v307
    %v313 = vmul.f32 1.0, %v312
    %v314 = vrcp.pop %v116
    %v315 = vmul.f32 %v116, %v314
    %v316 = vsub.f32 1.0, %v315
    %v317 = vmul.f32 %v314, %v316
    %v318 = vadd.f32 %v314, %v317
    %vm319 = vweird.f32 %v116
    %vm320 = vweird.f32 %v314
    %vm321 = vmor %vm319, %vm320
    %v322 = vsel %vm321, %v314, %v318
    %v323 = vand.u32 2147483647, %v116
    %vm324 = vcmp.eq.f32.partialorder %v323, 8.507059e+37
    %v325 = vand.u32 %v116, 2147483648
    %v326 = vor.u32 1.1754944e-38, %v325
    %v327 = vsel %vm324, %v326, %v322
    %v328 = vmul.f32 1.0, %v327
    %v329 = vrcp.pop %v117
    %v330 = vmul.f32 %v117, %v329
    %v331 = vsub.f32 1.0, %v330
    %v332 = vmul.f32 %v329, %v331
    %v333 = vadd.f32 %v329, %v332
    %vm334 = vweird.f32 %v117
    %vm335 = vweird.f32 %v329
    %vm336 = vmor %vm334, %vm335
    %v337 = vsel %vm336, %v329, %v333
    %v338 = vand.u32 2147483647, %v117
    %vm339 = vcmp.eq.f32.partialorder %v338, 8.507059e+37
    %v340 = vand.u32 %v117, 2147483648
    %v341 = vor.u32 1.1754944e-38, %v340
    %v342 = vsel %vm339, %v341, %v337
    %v343 = vmul.f32 1.0, %v342
    %v344 = vrcp.pop %v118
    %v345 = vmul.f32 %v118, %v344
    %v346 = vsub.f32 1.0, %v345
    %v347 = vmul.f32 %v344, %v346
    %v348 = vadd.f32 %v344, %v347
    %vm349 = vweird.f32 %v118
    %vm350 = vweird.f32 %v344
    %vm351 = vmor %vm349, %vm350
    %v352 = vsel %vm351, %v344, %v348
    %v353 = vand.u32 2147483647, %v118
    %vm354 = vcmp.eq.f32.partialorder %v353, 8.507059e+37
    %v355 = vand.u32 %v118, 2147483648
    %v356 = vor.u32 1.1754944e-38, %v355
    %v357 = vsel %vm354, %v356, %v352
    %v358 = vmul.f32 1.0, %v357
    %vm359 = vcmp.ge.f32.partialorder %v23, 0.0
    %vm360 = vcmp.ge.f32.partialorder %v24, 0.0
    %vm361 = vcmp.ge.f32.partialorder %v25, 0.0
    %vm362 = vcmp.ge.f32.partialorder %v26, 0.0
    %vm363 = vcmp.ge.f32.partialorder %v27, 0.0
    %vm364 = vcmp.ge.f32.partialorder %v28, 0.0
    %vm365 = vcmp.ge.f32.partialorder %v29, 0.0
    %vm366 = vcmp.ge.f32.partialorder %v30, 0.0
    %vm367 = vcmp.ge.f32.partialorder %v31, 0.0
    %vm368 = vcmp.ge.f32.partialorder %v32, 0.0
    %vm369 = vcmp.ge.f32.partialorder %v33, 0.0
    %vm370 = vcmp.ge.f32.partialorder %v34, 0.0
    %vm371 = vcmp.ge.f32.partialorder %v35, 0.0
    %vm372 = vcmp.ge.f32.partialorder %v36, 0.0
    %vm373 = vcmp.ge.f32.partialorder %v37, 0.0
    %vm374 = vcmp.ge.f32.partialorder %v38, 0.0
    %v375 = vmul.f32 %v72, %v133
    %v376 = vmul.f32 %v74, %v148
    %v377 = vmul.f32 %v76, %v163
    %v378 = vmul.f32 %v78, %v178
    %v379 = vmul.f32 %v80, %v193
    %v380 = vmul.f32 %v82, %v208
    %v381 = vmul.f32 %v84, %v223
    %v382 = vmul.f32 %v86, %v238
    %v383 = vmul.f32 %v88, %v253
    %v384 = vmul.f32 %v90, %v268
    %v385 = vmul.f32 %v92, %v283
    %v386 = vmul.f32 %v94, %v298
    %v387 = vmul.f32 %v96, %v313
    %v388 = vmul.f32 %v98, %v328
    %v389 = vmul.f32 %v100, %v343
    %v390 = vmul.f32 %v102, %v358
    %v391 = vsel %vm359, %v133, %v375
    %v392 = vsel %vm360, %v148, %v376
    %v393 = vsel %vm361, %v163, %v377
    %v394 = vsel %vm362, %v178, %v378
    %v395 = vsel %vm363, %v193, %v379
    %v396 = vsel %vm364, %v208, %v380
    %v397 = vsel %vm365, %v223, %v381
    %v398 = vsel %vm366, %v238, %v382
    %v399 = vsel %vm367, %v253, %v383
    %v400 = vsel %vm368, %v268, %v384
    %v401 = vsel %vm369, %v283, %v385
    %v402 = vsel %vm370, %v298, %v386
    %v403 = vsel %vm371, %v313, %v387
    %v404 = vsel %vm372, %v328, %v388
    %v405 = vsel %vm373, %v343, %v389
    %v406 = vsel %vm374, %v358, %v390
    %v407 = vmul.f32 %v23, %v391
    %v408 = vmul.f32 %v24, %v392
    %v409 = vmul.f32 %v25, %v393
    %v410 = vmul.f32 %v26, %v394
    %v411 = vmul.f32 %v27, %v395
    %v412 = vmul.f32 %v28, %v396
    %v413 = vmul.f32 %v29, %v397
    %v414 = vmul.f32 %v30, %v398
    %v415 = vmul.f32 %v31, %v399
    %v416 = vmul.f32 %v32, %v400
    %v417 = vmul.f32 %v33, %v401
    %v418 = vmul.f32 %v34, %v402
    %v419 = vmul.f32 %v35, %v403
    %v420 = vmul.f32 %v36, %v404
    %v421 = vmul.f32 %v37, %v405
    %v422 = vmul.f32 %v38, %v406
    %423 = vst [vmem:[#allocation5] sm:$0xff] %v407
    %424 = vst [vmem:[#allocation5 + $0x8] sm:$0xff] %v408
    %425 = vst [vmem:[#allocation5 + $0x10] sm:$0xff] %v409
    %426 = vst [vmem:[#allocation5 + $0x18] sm:$0xff] %v410
    %427 = vst [vmem:[#allocation5 + $0x20] sm:$0xff] %v411
    %428 = vst [vmem:[#allocation5 + $0x28] sm:$0xff] %v412
    %429 = vst [vmem:[#allocation5 + $0x30] sm:$0xff] %v413
    %430 = vst [vmem:[#allocation5 + $0x38] sm:$0xff] %v414
    %431 = vst [vmem:[#allocation5 + $0x40] sm:$0xff] %v415
    %432 = vst [vmem:[#allocation5 + $0x48] sm:$0xff] %v416
    %433 = vst [vmem:[#allocation5 + $0x50] sm:$0xff] %v417
    %434 = vst [vmem:[#allocation5 + $0x58] sm:$0xff] %v418
    %435 = vst [vmem:[#allocation5 + $0x60] sm:$0xff] %v419
    %436 = vst [vmem:[#allocation5 + $0x68] sm:$0xff] %v420
    %437 = vst [vmem:[#allocation5 + $0x70] sm:$0xff] %v421
    %438 = vst [vmem:[#allocation5 + $0x78] sm:$0xff] %v422
    // Predicated region
    $region10: #{tpu_custom_call.1} parent=1 // pred_check
      _
    $region11: #{tpu_custom_call.1} parent=1 // pred_check_branch
      %440 = sbr.rel (0) target = $region13
    $region12: #{tpu_custom_call.1} parent=1 // pred_region
      %442 = vsyncadd [#allocation4], 0
      %s444 = sshll.u32 [#allocation5], 4
      %s445 = int_to_ptr.vmem [resolvable:$true] %s444
      %s446 = sshll.u32 %s1, 4
      %s447 = int_to_ptr.hbm [resolvable:$true] %s446
      %449 = dma.vmem_to_hbm [thread:$0]  %s445, 2048, %s447, [#allocation4]
    $region13: #{tpu_custom_call.1} parent=1 // pred_fallthru
      _
    // Predicated region
    $region14: #{tpu_custom_call.1} parent=1 // pred_check
      _
    $region15: #{tpu_custom_call.1} parent=1 // pred_check_branch
      %451 = sbr.rel (0) target = $region17
    $region16: #{tpu_custom_call.1} parent=1 // pred_region
      %453 = dma.done [#allocation4], 2048
    $region17: #{tpu_custom_call.1} parent=1 // pred_fallthru
      _
    %454 = vsyncpa [#allocation3], 1
    %455 = vsyncpa [#allocation4], 1

</llo_original>
